<compile_context>
chip_gen: v7x
topology: tpu7x:2x2x1
jax: 0.10.0
libtpu: 0.0.40
codegen_flags: <defaults>
</compile_context>

<pallas_src>
import functools
import math

import jax
import jax.numpy as jnp
from jax.experimental import pallas as pl
from jax.experimental.pallas import tpu as pltpu

LANE = 128                    # TPU vreg lane width
COMPUTE_DTYPE = jnp.bfloat16  # MXU-native input dtype; accumulation stays f32


def _round_up(x, m):
    return (x + m - 1) // m * m


def make_mlp_kernel(depth, out_dim, compute_dtype):
    """Fused MLP over one batch tile.

    Refs: x_ref (TB, in_pad), w0_ref (in_pad, D), b0_ref (1, D),
          w_ref (depth-1, D, D), b_ref (depth-1, 1, D), o_ref (TB, out_dim),
    with D = 128-padded hidden width.  ReLU after every layer but the last.
    """

    def kernel(x_ref, w0_ref, b0_ref, w_ref, b_ref, o_ref):
        # First layer: small-K matmul (K = in_pad), f32 accumulation + f32 bias.
        acc = jnp.dot(x_ref[...], w0_ref[...],
                      preferred_element_type=jnp.float32) + b0_ref[...]
        # Remaining layers; static unroll (depth is small, e.g. 3).
        for i in range(depth - 1):
            h = jnp.maximum(acc, 0.0).astype(compute_dtype)   # ReLU on the VPU
            acc = jnp.dot(h, w_ref[i],
                          preferred_element_type=jnp.float32) + b_ref[i]
        # Store only the real output lanes (narrow f32 block -> 4x less HBM).
        o_ref[...] = acc[:, :out_dim].astype(o_ref.dtype)

    return kernel


def init_dnn_params(key, layers):
    """Deterministic init mimicking torch.nn.Linear defaults.

    W ~ U(-1/sqrt(fan_in), 1/sqrt(fan_in)), stored transposed as (in, out);
    b ~ same bound, stored as (out,).
    """
    params = []
    for i in range(len(layers) - 1):
        fan_in, fan_out = layers[i], layers[i + 1]
        key, kw, kb = jax.random.split(key, 3)
        bound = 1.0 / math.sqrt(fan_in)
        w = jax.random.uniform(kw, (fan_in, fan_out), jnp.float32, -bound, bound)
        b = jax.random.uniform(kb, (fan_out,), jnp.float32, -bound, bound)
        params.append((w, b))
    return params


def prepare_dnn_params(params, compute_dtype=COMPUTE_DTYPE):
    """One-time packing of Linear params into kernel operands (hoisted out of
    the per-call path).  Returns (packed_dict, out_dim)."""
    depth = len(params)
    assert depth >= 2, "kernel packing assumes at least one hidden layer"
    in_dim = params[0][0].shape[0]
    out_dim = int(params[-1][0].shape[1])

    d_pad = _round_up(max(p[0].shape[1] for p in params), LANE)
    in_pad = _round_up(in_dim, 16)   # bf16 sublane quantum

    w0, b0 = params[0]
    w0_p = jnp.zeros((in_pad, d_pad), compute_dtype)
    w0_p = w0_p.at[:in_dim, : w0.shape[1]].set(w0.astype(compute_dtype))
    b0_p = jnp.zeros((1, d_pad), jnp.float32).at[0, : b0.shape[0]].set(b0)

    w_rest = jnp.zeros((depth - 1, d_pad, d_pad), compute_dtype)
    b_rest = jnp.zeros((depth - 1, 1, d_pad), jnp.float32)
    for i, (w, b) in enumerate(params[1:]):
        fi, fo = w.shape
        w_rest = w_rest.at[i, :fi, :fo].set(w.astype(compute_dtype))
        b_rest = b_rest.at[i, 0, :fo].set(b)

    packed = {"w0": w0_p, "b0": b0_p, "w_rest": w_rest, "b_rest": b_rest}
    return packed, out_dim


def _pick_tile(batch, block_b):
    """Batch tile size: multiple of 16 rows; prefer 2 balanced tiles for
    moderate batches (v7x megacore), cap at block_b for large batches."""
    b16 = _round_up(batch, 16)
    if b16 <= 32:
        return b16
    half = _round_up((b16 + 1) // 2, 16)
    return min(half, _round_up(block_b, 16))


@functools.partial(jax.jit, static_argnames=("out_dim", "block_b"))
def dnn_forward(x, packed, *, out_dim, block_b=512):
    """Fused, batch-tiled MLP forward.  x: (B, in_dim) f32 -> (B, out_dim) f32."""
    w0, b0 = packed["w0"], packed["b0"]
    w_rest, b_rest = packed["w_rest"], packed["b_rest"]
    depth = w_rest.shape[0] + 1
    in_pad, d_pad = w0.shape
    B, in_dim = x.shape
    compute_dtype = w0.dtype

    tb = _pick_tile(B, block_b)
    b_pad = _round_up(B, tb)

    # Narrow lane pad (7 -> 16) + batch pad; fused by XLA under jit.
    x_pad = jnp.pad(x.astype(compute_dtype),
                    ((0, b_pad - B), (0, in_pad - in_dim)))

    grid = (b_pad // tb,)
    kernel = make_mlp_kernel(depth, out_dim, compute_dtype)

    out_padded = pl.pallas_call(
        kernel,
        out_shape=jax.ShapeDtypeStruct((b_pad, out_dim), jnp.float32),
        grid_spec=pltpu.PrefetchScalarGridSpec(
            num_scalar_prefetch=0,
            grid=grid,
            in_specs=[
                # streamed x tile (double-buffered by the pipeline)
                pl.BlockSpec((tb, in_pad), lambda i: (i, 0)),
                # VMEM-resident first-layer weight / bias (constant block)
                pl.BlockSpec((in_pad, d_pad), lambda i: (0, 0)),
                pl.BlockSpec((1, d_pad), lambda i: (0, 0)),
                # VMEM-resident stacked remaining weights / biases
                pl.BlockSpec((depth - 1, d_pad, d_pad), lambda i: (0, 0, 0)),
                pl.BlockSpec((depth - 1, 1, d_pad), lambda i: (0, 0, 0)),
            ],
            out_specs=pl.BlockSpec((tb, out_dim), lambda i: (i, 0)),
        ),
        compiler_params=pltpu.CompilerParams(
            dimension_semantics=("parallel",),  # shard batch tiles across TCs
        ),
    )(x_pad, w0, b0, w_rest, b_rest)

    return out_padded[:B]


def dnn_forward_ref(x, params, compute_dtype=COMPUTE_DTYPE):
    """Pure-JAX reference mirroring the kernel's bf16-in / f32-accumulate math."""
    h = x.astype(compute_dtype).astype(jnp.float32)
    depth = len(params)
    for i, (w, b) in enumerate(params):
        wq = w.astype(compute_dtype).astype(jnp.float32)
        acc = h @ wq + b.reshape(1, -1)
        if i < depth - 1:
            h = jnp.maximum(acc, 0.0).astype(compute_dtype).astype(jnp.float32)
        else:
            h = acc
    return h


if __name__ == "__main__":
    # Architecture consistent with the DeepONet-type script: input_encoding
    # would produce 7 features (1, cos(wx), cos(2wx), cos(4wx), sin(...)x3),
    # hidden width 64, output width 32.  forward() itself never calls
    # input_encoding, so only the MLP is implemented in the kernel.
    layers = [7, 64, 64, 32]
    batch = 384  # -> two balanced 192-row tiles, zero padding rows

    key = jax.random.PRNGKey(0)
    key, kx = jax.random.split(key)
    x = jax.random.normal(kx, (batch, layers[0]), dtype=jnp.float32)

    params = init_dnn_params(key, layers)
    packed, out_dim = prepare_dnn_params(params)   # one-time packing

    out = dnn_forward(x, packed, out_dim=out_dim)
    out = jax.block_until_ready(out)

    ref = dnn_forward_ref(x, params)
    assert out.shape == (batch, layers[-1])
    assert jnp.allclose(out, ref, atol=1e-3, rtol=1e-3), "Pallas output mismatch"

    print("KERNEL_OK")
</pallas_src>

<mosaic_0001>
module attributes {stable_mosaic.version = 11 : i64} {
  func.func @kernel(%arg0: i32, %arg1: memref<192x16xbf16, #tpu.memory_space<vmem>>, %arg2: memref<16x128xbf16, #tpu.memory_space<vmem>>, %arg3: memref<1x128xf32, #tpu.memory_space<vmem>>, %arg4: memref<2x128x128xbf16, #tpu.memory_space<vmem>>, %arg5: memref<2x1x128xf32, #tpu.memory_space<vmem>>, %arg6: memref<192x32xf32, #tpu.memory_space<vmem>>) attributes {dimension_semantics = [#tpu.dimension_semantics<parallel>], iteration_bounds = array<i64: 2>, scalar_prefetch = 0 : i64, scratch_operands = 0 : i64, tpu.core_type = #tpu.core_type<tc>, window_params = [{transform_indices = @transform_0, window_bounds = array<i64: 192, 16>}, {pipeline_mode = #tpu.pipeline_mode<synchronous>, transform_indices = @transform_1, window_bounds = array<i64: 16, 128>}, {pipeline_mode = #tpu.pipeline_mode<synchronous>, transform_indices = @transform_2, window_bounds = array<i64: 1, 128>}, {pipeline_mode = #tpu.pipeline_mode<synchronous>, transform_indices = @transform_3, window_bounds = array<i64: 2, 128, 128>}, {pipeline_mode = #tpu.pipeline_mode<synchronous>, transform_indices = @transform_4, window_bounds = array<i64: 2, 1, 128>}, {transform_indices = @transform_5, window_bounds = array<i64: 192, 32>}]} {
    %c0 = arith.constant 0 : index
    %c0_0 = arith.constant 0 : index
    %0 = vector.load %arg1[%c0, %c0_0] : memref<192x16xbf16, #tpu.memory_space<vmem>>, vector<192x16xbf16>
    %c0_1 = arith.constant 0 : index
    %c0_2 = arith.constant 0 : index
    %1 = vector.load %arg2[%c0_1, %c0_2] : memref<16x128xbf16, #tpu.memory_space<vmem>>, vector<16x128xbf16>
    %cst = arith.constant dense<0.000000e+00> : vector<192x128xf32>
    %2 = tpu.matmul %0, %1, %cst {dimension_numbers = #tpu.dot_dimension_numbers<[1], [0], [0], [1], [0, 0, 1, 1], [], []>} : vector<192x16xbf16>, vector<16x128xbf16>, vector<192x128xf32> -> vector<192x128xf32>
    %c0_3 = arith.constant 0 : index
    %c0_4 = arith.constant 0 : index
    %3 = vector.load %arg3[%c0_3, %c0_4] : memref<1x128xf32, #tpu.memory_space<vmem>>, vector<1x128xf32>
    %4 = vector.broadcast %3 : vector<1x128xf32> to vector<192x128xf32>
    %5 = arith.addf %2, %4 : vector<192x128xf32>
    %cst_5 = arith.constant 0.000000e+00 : f32
    %6 = vector.broadcast %cst_5 : f32 to vector<192x128xf32>
    %7 = arith.maximumf %5, %6 : vector<192x128xf32>
    %8 = arith.truncf %7 : vector<192x128xf32> to vector<192x128xbf16>
    %c0_6 = arith.constant 0 : index
    %c0_7 = arith.constant 0 : index
    %c0_8 = arith.constant 0 : index
    %9 = vector.load %arg4[%c0_6, %c0_7, %c0_8] : memref<2x128x128xbf16, #tpu.memory_space<vmem>>, vector<1x128x128xbf16>
    %10 = vector.shape_cast %9 : vector<1x128x128xbf16> to vector<128x128xbf16>
    %cst_9 = arith.constant dense<0.000000e+00> : vector<192x128xf32>
    %11 = tpu.matmul %8, %10, %cst_9 {dimension_numbers = #tpu.dot_dimension_numbers<[1], [0], [0], [1], [0, 0, 1, 1], [], []>} : vector<192x128xbf16>, vector<128x128xbf16>, vector<192x128xf32> -> vector<192x128xf32>
    %c0_10 = arith.constant 0 : index
    %c0_11 = arith.constant 0 : index
    %c0_12 = arith.constant 0 : index
    %12 = vector.load %arg5[%c0_10, %c0_11, %c0_12] : memref<2x1x128xf32, #tpu.memory_space<vmem>>, vector<1x1x128xf32>
    %13 = vector.shape_cast %12 : vector<1x1x128xf32> to vector<1x128xf32>
    %14 = vector.broadcast %13 : vector<1x128xf32> to vector<192x128xf32>
    %15 = arith.addf %11, %14 : vector<192x128xf32>
    %cst_13 = arith.constant 0.000000e+00 : f32
    %16 = vector.broadcast %cst_13 : f32 to vector<192x128xf32>
    %17 = arith.maximumf %15, %16 : vector<192x128xf32>
    %18 = arith.truncf %17 : vector<192x128xf32> to vector<192x128xbf16>
    %c1 = arith.constant 1 : index
    %c0_14 = arith.constant 0 : index
    %c0_15 = arith.constant 0 : index
    %19 = vector.load %arg4[%c1, %c0_14, %c0_15] : memref<2x128x128xbf16, #tpu.memory_space<vmem>>, vector<1x128x128xbf16>
    %20 = vector.shape_cast %19 : vector<1x128x128xbf16> to vector<128x128xbf16>
    %cst_16 = arith.constant dense<0.000000e+00> : vector<192x128xf32>
    %21 = tpu.matmul %18, %20, %cst_16 {dimension_numbers = #tpu.dot_dimension_numbers<[1], [0], [0], [1], [0, 0, 1, 1], [], []>} : vector<192x128xbf16>, vector<128x128xbf16>, vector<192x128xf32> -> vector<192x128xf32>
    %c1_17 = arith.constant 1 : index
    %c0_18 = arith.constant 0 : index
    %c0_19 = arith.constant 0 : index
    %22 = vector.load %arg5[%c1_17, %c0_18, %c0_19] : memref<2x1x128xf32, #tpu.memory_space<vmem>>, vector<1x1x128xf32>
    %23 = vector.shape_cast %22 : vector<1x1x128xf32> to vector<1x128xf32>
    %24 = vector.broadcast %23 : vector<1x128xf32> to vector<192x128xf32>
    %25 = arith.addf %21, %24 : vector<192x128xf32>
    %26 = vector.extract_strided_slice %25 {offsets = [0, 0], sizes = [192, 32], strides = [1, 1]} : vector<192x128xf32> to vector<192x32xf32>
    %c0_20 = arith.constant 0 : index
    %c0_21 = arith.constant 0 : index
    %27 = vector.load %arg6[%c0_20, %c0_21] : memref<192x32xf32, #tpu.memory_space<vmem>>, vector<192x32xf32>
    tpu.vector_store %arg6[%c0_20, %c0_21], %26 {strides = array<i32>} : memref<192x32xf32, #tpu.memory_space<vmem>>, vector<192x32xf32>,
    return
  }
  func.func @transform_0(%arg0: i32) -> (i32, i32) {
    %c0_i32 = arith.constant 0 : i32
    %c0_i32_0 = arith.constant 0 : i32
    return %arg0, %c0_i32 : i32, i32
  }
  func.func @transform_1(%arg0: i32) -> (i32, i32) {
    %c0_i32 = arith.constant 0 : i32
    %c0_i32_0 = arith.constant 0 : i32
    %c0_i32_1 = arith.constant 0 : i32
    return %c0_i32, %c0_i32_0 : i32, i32
  }
  func.func @transform_2(%arg0: i32) -> (i32, i32) {
    %c0_i32 = arith.constant 0 : i32
    %c0_i32_0 = arith.constant 0 : i32
    %c0_i32_1 = arith.constant 0 : i32
    return %c0_i32, %c0_i32_0 : i32, i32
  }
  func.func @transform_3(%arg0: i32) -> (i32, i32, i32) {
    %c0_i32 = arith.constant 0 : i32
    %c0_i32_0 = arith.constant 0 : i32
    %c0_i32_1 = arith.constant 0 : i32
    %c0_i32_2 = arith.constant 0 : i32
    return %c0_i32, %c0_i32_0, %c0_i32_1 : i32, i32, i32
  }
  func.func @transform_4(%arg0: i32) -> (i32, i32, i32) {
    %c0_i32 = arith.constant 0 : i32
    %c0_i32_0 = arith.constant 0 : i32
    %c0_i32_1 = arith.constant 0 : i32
    %c0_i32_2 = arith.constant 0 : i32
    return %c0_i32, %c0_i32_0, %c0_i32_1 : i32, i32, i32
  }
  func.func @transform_5(%arg0: i32) -> (i32, i32) {
    %c0_i32 = arith.constant 0 : i32
    %c0_i32_0 = arith.constant 0 : i32
    return %arg0, %c0_i32 : i32, i32
  }
}

</mosaic_0001>

<llo_original>
// kernel: dnn_forward.1
$region0: #{dnn_forward.1}
  #allocation0 [shape = 'u32[]', space=smem, size = 0x4, offset = 0x4, fixed_abs, tag = 'smem constant byte address 0x4 - core index']
  #allocation1 [shape = 'u32[144,128]{1,0:T(1,128)}', space=vmem, size = 0x12000, scoped, tag = 'internal scratch']
  %s0 = inlined_call_operand.vmem [shape: bf16[384,16], index: 0, kind: input, shape index: {}]
  %s1 = inlined_call_operand.vmem [shape: bf16[16,128], index: 1, kind: input, shape index: {}]
  %s2 = inlined_call_operand.vmem [shape: f32[1,128], index: 2, kind: input, shape index: {}]
  %s3 = inlined_call_operand.vmem [shape: bf16[2,128,128], index: 3, kind: input, shape index: {}]
  %s4 = inlined_call_operand.vmem [shape: f32[2,1,128], index: 4, kind: input, shape index: {}]
  %s5 = inlined_call_operand.vmem [shape: f32[384,32], index: 5, kind: output, shape index: {}]
  %s6 = sld [smem:[#allocation0]]
  $region53: #{dnn_forward.1} parent=0
    _
  %s8 = ssub.s32 1, %s6
  %s9 = scalar_select 0, %s8, %s6
  loop: start=0, step=1, limit=4
  $region2: #{dnn_forward.1} parent=0 // loop_pre_header
    _
  $region3: #{dnn_forward.1} parent=0 // loop_header
    %s11 = sphi 0, %s15
    %p12 = scmp.ge.s32.totalorder %s11, 4
    %s21 = sphi 0, %s23
    %s24 = sphi 0, %s21
    %s25 = sphi 0, %s24
    %s41 = sphi 0, %s25
    %s45 = sphi 0, %s45
    %s47 = sphi 0, %s45
    %s48 = sphi 0, %s47
    %s62 = sphi 0, %s48
    %s66 = sphi 0, %s66
    %s68 = sphi 0, %s66
    %s69 = sphi 0, %s68
    %s83 = sphi 0, %s69
    %s87 = sphi 0, %s87
    %s89 = sphi 0, %s87
    %s90 = sphi 0, %s89
    %s104 = sphi 0, %s90
    %s108 = sphi 0, %s108
    %s110 = sphi 0, %s108
    %s111 = sphi 0, %s110
    %s125 = sphi 0, %s111
    %s131 = sphi 0, %s133
    %s134 = sphi 0, %s131
    %s135 = sphi 0, %s134
    %s151 = sphi 0, %s135
  $region4: #{dnn_forward.1} parent=0 // loop_header_branch
    %14 = sbr.rel (%p12) target = $region8
  $region5: #{dnn_forward.1} parent=0 // loop_body
    %s16 = ssub.s32 %s11, 1
    %s17 = ssub.s32 %s11, 2
    %s18 = sadd.s32 %s11, 1
    %s19 = ssub.s32 %s11, %s18
    %p20 = scmp.eq.s32.totalorder %s19, 0
    %s22 = sadd.s32 %s21, 1
    %s23 = scalar_select %p20, %s21, %s22
    %p26 = pneg %p20
    %p27 = scmp.eq.s32.totalorder %s11, 1
    %p28 = por %p26, %p27
    %p29 = scmp.ne.s32.totalorder %s21, %s24
    %p30 = scmp.eq.s32.totalorder %s11, 0
    %p31 = por %p29, %p30
    %p32 = scmp.ne.s32.totalorder %s21, %s24
    %p33 = scmp.eq.s32.totalorder %s16, 1
    %p34 = por %p32, %p33
    %p35 = scmp.ne.s32.totalorder %s24, %s25
    %p36 = scmp.eq.s32.totalorder %s16, 0
    %p37 = por %p35, %p36
    %p38 = scmp.ne.s32.totalorder %s24, %s25
    %p39 = scmp.eq.s32.totalorder %s17, 1
    %p40 = por %p38, %p39
    %p42 = scmp.ne.s32.totalorder %s25, %s41
    %p43 = scmp.eq.s32.totalorder %s17, 0
    %p44 = por %p42, %p43
    %s46 = sadd.s32 %s45, 1
    %p49 = scmp.eq.s32.totalorder %s11, 1
    %p50 = scmp.ne.s32.totalorder %s45, %s47
    %p51 = scmp.eq.s32.totalorder %s11, 0
    %p52 = por %p50, %p51
    %p53 = scmp.ne.s32.totalorder %s45, %s47
    %p54 = scmp.eq.s32.totalorder %s16, 1
    %p55 = por %p53, %p54
    %p56 = scmp.ne.s32.totalorder %s47, %s48
    %p57 = scmp.eq.s32.totalorder %s16, 0
    %p58 = por %p56, %p57
    %p59 = scmp.ne.s32.totalorder %s47, %s48
    %p60 = scmp.eq.s32.totalorder %s17, 1
    %p61 = por %p59, %p60
    %p63 = scmp.ne.s32.totalorder %s48, %s62
    %p64 = scmp.eq.s32.totalorder %s17, 0
    %p65 = por %p63, %p64
    %s67 = sadd.s32 %s66, 1
    %p70 = scmp.eq.s32.totalorder %s11, 1
    %p71 = scmp.ne.s32.totalorder %s66, %s68
    %p72 = scmp.eq.s32.totalorder %s11, 0
    %p73 = por %p71, %p72
    %p74 = scmp.ne.s32.totalorder %s66, %s68
    %p75 = scmp.eq.s32.totalorder %s16, 1
    %p76 = por %p74, %p75
    %p77 = scmp.ne.s32.totalorder %s68, %s69
    %p78 = scmp.eq.s32.totalorder %s16, 0
    %p79 = por %p77, %p78
    %p80 = scmp.ne.s32.totalorder %s68, %s69
    %p81 = scmp.eq.s32.totalorder %s17, 1
    %p82 = por %p80, %p81
    %p84 = scmp.ne.s32.totalorder %s69, %s83
    %p85 = scmp.eq.s32.totalorder %s17, 0
    %p86 = por %p84, %p85
    %s88 = sadd.s32 %s87, 1
    %p91 = scmp.eq.s32.totalorder %s11, 1
    %p92 = scmp.ne.s32.totalorder %s87, %s89
    %p93 = scmp.eq.s32.totalorder %s11, 0
    %p94 = por %p92, %p93
    %p95 = scmp.ne.s32.totalorder %s87, %s89
    %p96 = scmp.eq.s32.totalorder %s16, 1
    %p97 = por %p95, %p96
    %p98 = scmp.ne.s32.totalorder %s89, %s90
    %p99 = scmp.eq.s32.totalorder %s16, 0
    %p100 = por %p98, %p99
    %p101 = scmp.ne.s32.totalorder %s89, %s90
    %p102 = scmp.eq.s32.totalorder %s17, 1
    %p103 = por %p101, %p102
    %p105 = scmp.ne.s32.totalorder %s90, %s104
    %p106 = scmp.eq.s32.totalorder %s17, 0
    %p107 = por %p105, %p106
    %s109 = sadd.s32 %s108, 1
    %p112 = scmp.eq.s32.totalorder %s11, 1
    %p113 = scmp.ne.s32.totalorder %s108, %s110
    %p114 = scmp.eq.s32.totalorder %s11, 0
    %p115 = por %p113, %p114
    %p116 = scmp.ne.s32.totalorder %s108, %s110
    %p117 = scmp.eq.s32.totalorder %s16, 1
    %p118 = por %p116, %p117
    %p119 = scmp.ne.s32.totalorder %s110, %s111
    %p120 = scmp.eq.s32.totalorder %s16, 0
    %p121 = por %p119, %p120
    %p122 = scmp.ne.s32.totalorder %s110, %s111
    %p123 = scmp.eq.s32.totalorder %s17, 1
    %p124 = por %p122, %p123
    %p126 = scmp.ne.s32.totalorder %s111, %s125
    %p127 = scmp.eq.s32.totalorder %s17, 0
    %p128 = por %p126, %p127
    %s129 = ssub.s32 %s11, %s18
    %p130 = scmp.eq.s32.totalorder %s129, 0
    %s132 = sadd.s32 %s131, 1
    %s133 = scalar_select %p130, %s131, %s132
    %p136 = pneg %p130
    %p137 = scmp.eq.s32.totalorder %s11, 1
    %p138 = por %p136, %p137
    %p139 = scmp.ne.s32.totalorder %s131, %s134
    %p140 = scmp.eq.s32.totalorder %s11, 0
    %p141 = por %p139, %p140
    %p142 = scmp.ne.s32.totalorder %s131, %s134
    %p143 = scmp.eq.s32.totalorder %s16, 1
    %p144 = por %p142, %p143
    %p145 = scmp.ne.s32.totalorder %s134, %s135
    %p146 = scmp.eq.s32.totalorder %s16, 0
    %p147 = por %p145, %p146
    %p148 = scmp.ne.s32.totalorder %s134, %s135
    %p149 = scmp.eq.s32.totalorder %s17, 1
    %p150 = por %p148, %p149
    %p152 = scmp.ne.s32.totalorder %s135, %s151
    %p153 = scmp.eq.s32.totalorder %s17, 0
    %p154 = por %p152, %p153
    %p155 = scmp.le.s32.totalorder 1, %s11
    %p156 = scmp.lt.s32.totalorder %s11, 3
    %p157 = pnand %p155, %p156
    %p158 = pneg %p157
    // Predicated region
    $region9: #{dnn_forward.1} parent=5 // pred_check
      _
    $region10: #{dnn_forward.1} parent=5 // pred_check_branch
      %160 = sbr.rel (%p157) target = $region12
    $region11: #{dnn_forward.1} parent=5 // pred_region
      %s161 = ssub.s32 %s11, 1
      // Predicated region
      $region13: #{dnn_forward.1} parent=11 // pred_check
        %p162 = pneg %p58
      $region14: #{dnn_forward.1} parent=11 // pred_check_branch
        %164 = sbr.rel (%p162) target = $region16
      $region15: #{dnn_forward.1} parent=11 // pred_region
        _
      $region16: #{dnn_forward.1} parent=11 // pred_fallthru
        _
      // Predicated region
      $region17: #{dnn_forward.1} parent=11 // pred_check
        %p165 = pneg %p79
      $region18: #{dnn_forward.1} parent=11 // pred_check_branch
        %167 = sbr.rel (%p165) target = $region20
      $region19: #{dnn_forward.1} parent=11 // pred_region
        _
      $region20: #{dnn_forward.1} parent=11 // pred_fallthru
        _
      // Predicated region
      $region21: #{dnn_forward.1} parent=11 // pred_check
        %p168 = pneg %p100
      $region22: #{dnn_forward.1} parent=11 // pred_check_branch
        %170 = sbr.rel (%p168) target = $region24
      $region23: #{dnn_forward.1} parent=11 // pred_region
        _
      $region24: #{dnn_forward.1} parent=11 // pred_fallthru
        _
      // Predicated region
      $region25: #{dnn_forward.1} parent=11 // pred_check
        %p171 = pneg %p121
      $region26: #{dnn_forward.1} parent=11 // pred_check_branch
        %173 = sbr.rel (%p171) target = $region28
      $region27: #{dnn_forward.1} parent=11 // pred_region
        _
      $region28: #{dnn_forward.1} parent=11 // pred_fallthru
        _
    $region12: #{dnn_forward.1} parent=5 // pred_fallthru
      _
    %p174 = scmp.lt.s32.totalorder %s11, 2
    // Predicated region
    $region29: #{dnn_forward.1} parent=5 // pred_check
      %p175 = pneg %p174
    $region30: #{dnn_forward.1} parent=5 // pred_check_branch
      %177 = sbr.rel (%p175) target = $region32
    $region31: #{dnn_forward.1} parent=5 // pred_region
      // Predicated region
      $region33: #{dnn_forward.1} parent=31 // pred_check
        %p178 = pneg %p31
      $region34: #{dnn_forward.1} parent=31 // pred_check_branch
        %180 = sbr.rel (%p178) target = $region36
      $region35: #{dnn_forward.1} parent=31 // pred_region
        %s181 = smul.u32 24, %s11
        %p182 = scmp.lt.s32.totalorder %s181, 47
        %s183 = scalar_select %p182, %s181, 47
        %s184 = smul.addr %s183, 4
        %s185 = scalar_lea.vmem %s0, %s184
        %s186 = smul.u32 24, %s11
      $region36: #{dnn_forward.1} parent=31 // pred_fallthru
        _
    $region32: #{dnn_forward.1} parent=5 // pred_fallthru
      _
    %p187 = scmp.le.s32.totalorder 1, %s11
    %p188 = scmp.lt.s32.totalorder %s11, 3
    %p189 = pnand %p187, %p188
    %p190 = pneg %p189
    // Predicated region
    $region37: #{dnn_forward.1} parent=5 // pred_check
      _
    $region38: #{dnn_forward.1} parent=5 // pred_check_branch
      %192 = sbr.rel (%p189) target = $region40
    $region39: #{dnn_forward.1} parent=5 // pred_region
      %s193 = ssub.s32 %s11, 1
      %s194 = smul.u32 24, %s16
      %p195 = scmp.lt.s32.totalorder %s194, 47
      %s196 = scalar_select %p195, %s194, 47
      %s197 = smul.addr %s196, 4
      %s198 = scalar_lea.vmem %s0, %s197
      %p199 = pneg %p37
      %p200 = pneg %p34
      %p201 = pneg %p58
      %p202 = pneg %p55
      %p203 = pneg %p79
      %p204 = pneg %p76
      %p205 = pneg %p100
      %p206 = pneg %p97
      %p207 = pneg %p121
      %p208 = pneg %p118
      %p209 = pneg %p147
      %p210 = pneg %p144
      %s211 = smul.u32 24, %s16
      %p212 = scmp.lt.s32.totalorder %s211, 47
      %s213 = scalar_select %p212, %s211, 47
      %s214 = smul.addr %s213, 8
      %s215 = scalar_lea.vmem %s5, %s214
      %s216 = smul.u32 24, %s16
      %p217 = scmp.lt.s32.totalorder %s216, 47
      %s218 = scalar_select %p217, %s216, 47
      %s219 = smul.addr %s218, 4
      %s220 = scalar_lea.vmem %s0, %s219
      %s221 = smul.u32 24, %s16
      %s222 = smul.u32 24, %s16
      %p223 = scmp.lt.s32.totalorder %s222, 47
      %s224 = scalar_select %p223, %s222, 47
      %s225 = smul.addr %s224, 8
      %s226 = scalar_lea.vmem %s5, %s225
      %s227 = smul.u32 24, %s16
      %v229 = vld [vmem:[%s220] sm:$0xf]
      %v230 = vld [vmem:[%s220 + $0x4] sm:$0xf]
      %v231 = vld [vmem:[%s220 + $0x8] sm:$0xf]
      %v232 = vld [vmem:[%s220 + $0xc] sm:$0xf]
      %v233 = vld [vmem:[%s220 + $0x10] sm:$0xf]
      %v234 = vld [vmem:[%s220 + $0x14] sm:$0xf]
      %v235 = vld [vmem:[%s220 + $0x18] sm:$0xf]
      %v236 = vld [vmem:[%s220 + $0x1c] sm:$0xf]
      %v237 = vld [vmem:[%s220 + $0x20] sm:$0xf]
      %v238 = vld [vmem:[%s220 + $0x24] sm:$0xf]
      %v239 = vld [vmem:[%s220 + $0x28] sm:$0xf]
      %v240 = vld [vmem:[%s220 + $0x2c] sm:$0xf]
      %v241 = vld [vmem:[%s220 + $0x30] sm:$0xf]
      %v242 = vld [vmem:[%s220 + $0x34] sm:$0xf]
      %v243 = vld [vmem:[%s220 + $0x38] sm:$0xf]
      %v244 = vld [vmem:[%s220 + $0x3c] sm:$0xf]
      %v245 = vld [vmem:[%s220 + $0x40] sm:$0xf]
      %v246 = vld [vmem:[%s220 + $0x44] sm:$0xf]
      %v247 = vld [vmem:[%s220 + $0x48] sm:$0xf]
      %v248 = vld [vmem:[%s220 + $0x4c] sm:$0xf]
      %v249 = vld [vmem:[%s220 + $0x50] sm:$0xf]
      %v250 = vld [vmem:[%s220 + $0x54] sm:$0xf]
      %v251 = vld [vmem:[%s220 + $0x58] sm:$0xf]
      %v252 = vld [vmem:[%s220 + $0x5c] sm:$0xf]
      %v253 = vld [vmem:[%s1] sm:$0xf]
      %v254 = vld [vmem:[%s1 + $0x4] sm:$0xf]
      %v255 = vld [vmem:[%s2] sm:$0x1]
      %v257 = vlaneseq
      %v258 = vshrl.u32 %v257, 7
      %v259 = vsub.s32 0, %v258
      %v260 = vrot.slane %v255, %v259
      %v286 = vunpack.c.l.b16 %v229
      %v287 = vunpack.c.l.b16 %v230
      %v288 = vunpack.c.l.b16 %v231
      %v289 = vunpack.c.l.b16 %v232
      %v290 = vunpack.c.l.b16 %v233
      %v291 = vunpack.c.l.b16 %v234
      %v292 = vunpack.c.l.b16 %v235
      %v293 = vunpack.c.l.b16 %v236
      %v294 = vunpack.c.l.b16 %v237
      %v295 = vunpack.c.l.b16 %v238
      %v296 = vunpack.c.l.b16 %v239
      %v297 = vunpack.c.l.b16 %v240
      %v298 = vunpack.c.l.b16 %v241
      %v299 = vunpack.c.l.b16 %v242
      %v300 = vunpack.c.l.b16 %v243
      %v301 = vunpack.c.l.b16 %v244
      %v302 = vunpack.c.l.b16 %v245
      %v303 = vunpack.c.l.b16 %v246
      %v304 = vunpack.c.l.b16 %v247
      %v305 = vunpack.c.l.b16 %v248
      %v306 = vunpack.c.l.b16 %v249
      %v307 = vunpack.c.l.b16 %v250
      %v308 = vunpack.c.l.b16 %v251
      %v309 = vunpack.c.l.b16 %v252
      %v310 = vpack.c.b16 %v287, %v286
      %v311 = vpack.c.b16 %v289, %v288
      %v312 = vpack.c.b16 %v291, %v290
      %v313 = vpack.c.b16 %v293, %v292
      %v314 = vpack.c.b16 %v295, %v294
      %v315 = vpack.c.b16 %v297, %v296
      %v316 = vpack.c.b16 %v299, %v298
      %v317 = vpack.c.b16 %v301, %v300
      %v318 = vpack.c.b16 %v303, %v302
      %v319 = vpack.c.b16 %v305, %v304
      %v320 = vpack.c.b16 %v307, %v306
      %v321 = vpack.c.b16 %v309, %v308
      %v324 = vunpack.c.l.b16 %v253
      %v325 = vunpack.c.l.b16 %v254
      %v326 = vpack.c.b16 %v325, %v324
      %vm328 = vcmask 130048
      %v330 = vsel %vm328, %v310, 0
      %v333 = vsel %vm328, %v311, 0
      %v336 = vsel %vm328, %v312, 0
      %v339 = vsel %vm328, %v313, 0
      %v342 = vsel %vm328, %v314, 0
      %v345 = vsel %vm328, %v315, 0
      %v348 = vsel %vm328, %v316, 0
      %v351 = vsel %vm328, %v317, 0
      %v354 = vsel %vm328, %v318, 0
      %v357 = vsel %vm328, %v319, 0
      %v360 = vsel %vm328, %v320, 0
      %v363 = vsel %vm328, %v321, 0
      %365 = vmatprep.subr.bf16.mxu0 0
      %366 = vmatpush1.bf16.msra.mxu0 %v326
      %367 = vmatprep.subr.bf16.mxu0 0
      %368 = vmatpush1.bf16.msra.mxu0 0
      %369 = vmatprep.subr.bf16.mxu0 0
      %370 = vmatpush1.bf16.msra.mxu0 0
      %371 = vmatprep.subr.bf16.mxu0 0
      %372 = vmatpush1.bf16.msra.mxu0 0
      %373 = vmatprep.subr.bf16.mxu0 0
      %374 = vmatpush1.bf16.msra.mxu0 0
      %375 = vmatprep.subr.bf16.mxu0 0
      %376 = vmatpush1.bf16.msra.mxu0 0
      %377 = vmatprep.subr.bf16.mxu0 0
      %378 = vmatpush1.bf16.msra.mxu0 0
      %379 = vmatprep.subr.bf16.mxu0 0
      %380 = vmatpush1.bf16.msra.mxu0 0
      %381 = vmatprep.subr.bf16.mxu0 0
      %382 = vmatpush1.bf16.msra.mxu0 0
      %383 = vmatprep.subr.bf16.mxu0 0
      %384 = vmatpush1.bf16.msra.mxu0 0
      %385 = vmatprep.subr.bf16.mxu0 0
      %386 = vmatpush1.bf16.msra.mxu0 0
      %387 = vmatprep.subr.bf16.mxu0 0
      %388 = vmatpush1.bf16.msra.mxu0 0
      %389 = vmatprep.subr.bf16.mxu0 0
      %390 = vmatpush1.bf16.msra.mxu0 0
      %391 = vmatprep.subr.bf16.mxu0 0
      %392 = vmatpush1.bf16.msra.mxu0 0
      %393 = vmatprep.subr.bf16.mxu0 0
      %394 = vmatpush1.bf16.msra.mxu0 0
      %395 = vmatprep.subr.bf16.mxu0 0
      %396 = vmatpush1.bf16.msra.mxu0 0
      %397 = vmatprep.mubr.bf16.mxu0 0
      %398 = vmatmul.mubr.bf16.gmra.mrb[0].mxu0 %v330
      %v399 = vpop.f32.mrb[0].mxu0
      %v400 = vadd.f32 %v260, %v399
      %v401 = vpop.f32.mrb[0].mxu0
      %v402 = vpop.f32.mrb[0].mxu0
      %v403 = vadd.f32 %v260, %v402
      %v404 = vpop.f32.mrb[0].mxu0
      %405 = vmatprep.mubr.bf16.mxu0 0
      %406 = vmatmul.mubr.bf16.gmra.mrb[0].mxu0 %v333
      %v407 = vpop.f32.mrb[0].mxu0
      %v408 = vadd.f32 %v260, %v407
      %v409 = vpop.f32.mrb[0].mxu0
      %v410 = vpop.f32.mrb[0].mxu0
      %v411 = vadd.f32 %v260, %v410
      %v412 = vpop.f32.mrb[0].mxu0
      %413 = vmatprep.mubr.bf16.mxu0 0
      %414 = vmatmul.mubr.bf16.gmra.mrb[0].mxu0 %v336
      %v415 = vpop.f32.mrb[0].mxu0
      %v416 = vadd.f32 %v260, %v415
      %v417 = vpop.f32.mrb[0].mxu0
      %v418 = vpop.f32.mrb[0].mxu0
      %v419 = vadd.f32 %v260, %v418
      %v420 = vpop.f32.mrb[0].mxu0
      %421 = vmatprep.mubr.bf16.mxu0 0
      %422 = vmatmul.mubr.bf16.gmra.mrb[0].mxu0 %v339
      %v423 = vpop.f32.mrb[0].mxu0
      %v424 = vadd.f32 %v260, %v423
      %v425 = vpop.f32.mrb[0].mxu0
      %v426 = vpop.f32.mrb[0].mxu0
      %v427 = vadd.f32 %v260, %v426
      %v428 = vpop.f32.mrb[0].mxu0
      %429 = vmatprep.mubr.bf16.mxu0 0
      %430 = vmatmul.mubr.bf16.gmra.mrb[0].mxu0 %v342
      %v431 = vpop.f32.mrb[0].mxu0
      %v432 = vadd.f32 %v260, %v431
      %v433 = vpop.f32.mrb[0].mxu0
      %v434 = vpop.f32.mrb[0].mxu0
      %v435 = vadd.f32 %v260, %v434
      %v436 = vpop.f32.mrb[0].mxu0
      %437 = vmatprep.mubr.bf16.mxu0 0
      %438 = vmatmul.mubr.bf16.gmra.mrb[0].mxu0 %v345
      %v439 = vpop.f32.mrb[0].mxu0
      %v440 = vadd.f32 %v260, %v439
      %v441 = vpop.f32.mrb[0].mxu0
      %v442 = vpop.f32.mrb[0].mxu0
      %v443 = vadd.f32 %v260, %v442
      %v444 = vpop.f32.mrb[0].mxu0
      %445 = vmatprep.mubr.bf16.mxu0 0
      %446 = vmatmul.mubr.bf16.gmra.mrb[0].mxu0 %v348
      %v447 = vpop.f32.mrb[0].mxu0
      %v448 = vadd.f32 %v260, %v447
      %v449 = vpop.f32.mrb[0].mxu0
      %v450 = vpop.f32.mrb[0].mxu0
      %v451 = vadd.f32 %v260, %v450
      %v452 = vpop.f32.mrb[0].mxu0
      %453 = vmatprep.mubr.bf16.mxu0 0
      %454 = vmatmul.mubr.bf16.gmra.mrb[0].mxu0 %v351
      %v455 = vpop.f32.mrb[0].mxu0
      %v456 = vadd.f32 %v260, %v455
      %v457 = vpop.f32.mrb[0].mxu0
      %v458 = vpop.f32.mrb[0].mxu0
      %v459 = vadd.f32 %v260, %v458
      %v460 = vpop.f32.mrb[0].mxu0
      %461 = vmatprep.mubr.bf16.mxu0 0
      %462 = vmatmul.mubr.bf16.gmra.mrb[0].mxu0 %v354
      %v463 = vpop.f32.mrb[0].mxu0
      %v464 = vadd.f32 %v260, %v463
      %v465 = vpop.f32.mrb[0].mxu0
      %v466 = vpop.f32.mrb[0].mxu0
      %v467 = vadd.f32 %v260, %v466
      %v468 = vpop.f32.mrb[0].mxu0
      %469 = vmatprep.mubr.bf16.mxu0 0
      %470 = vmatmul.mubr.bf16.gmra.mrb[0].mxu0 %v357
      %v471 = vpop.f32.mrb[0].mxu0
      %v472 = vadd.f32 %v260, %v471
      %v473 = vpop.f32.mrb[0].mxu0
      %v474 = vpop.f32.mrb[0].mxu0
      %v475 = vadd.f32 %v260, %v474
      %v476 = vpop.f32.mrb[0].mxu0
      %477 = vmatprep.mubr.bf16.mxu0 0
      %478 = vmatmul.mubr.bf16.gmra.mrb[0].mxu0 %v360
      %v479 = vpop.f32.mrb[0].mxu0
      %v480 = vadd.f32 %v260, %v479
      %v481 = vpop.f32.mrb[0].mxu0
      %v482 = vpop.f32.mrb[0].mxu0
      %v483 = vadd.f32 %v260, %v482
      %v484 = vpop.f32.mrb[0].mxu0
      %485 = vmatprep.mubr.bf16.mxu0 0
      %486 = vmatmul.mubr.bf16.gmra.mrb[0].mxu0 %v363
      %v487 = vpop.f32.mrb[0].mxu0
      %v488 = vadd.f32 %v260, %v487
      %v489 = vpop.f32.mrb[0].mxu0
      %v490 = vpop.f32.mrb[0].mxu0
      %v491 = vadd.f32 %v260, %v490
      %v492 = vpop.f32.mrb[0].mxu0
      %493 = vdwg.mxu0
      %v494 = vmax.f32 %v400, 0.0
      %v495 = vmax.f32 %v403, 0.0
      %v496 = vmax.f32 %v408, 0.0
      %v497 = vmax.f32 %v411, 0.0
      %v498 = vmax.f32 %v416, 0.0
      %v499 = vmax.f32 %v419, 0.0
      %v500 = vmax.f32 %v424, 0.0
      %v501 = vmax.f32 %v427, 0.0
      %v502 = vmax.f32 %v432, 0.0
      %v503 = vmax.f32 %v435, 0.0
      %v504 = vmax.f32 %v440, 0.0
      %v505 = vmax.f32 %v443, 0.0
      %v506 = vmax.f32 %v448, 0.0
      %v507 = vmax.f32 %v451, 0.0
      %v508 = vmax.f32 %v456, 0.0
      %v509 = vmax.f32 %v459, 0.0
      %v510 = vmax.f32 %v464, 0.0
      %v511 = vmax.f32 %v467, 0.0
      %v512 = vmax.f32 %v472, 0.0
      %v513 = vmax.f32 %v475, 0.0
      %v514 = vmax.f32 %v480, 0.0
      %v515 = vmax.f32 %v483, 0.0
      %v516 = vmax.f32 %v488, 0.0
      %v517 = vmax.f32 %v491, 0.0
      %v518 = vpack.c.bf16 %v495, %v494
      %v519 = vpack.c.bf16 %v497, %v496
      %v520 = vpack.c.bf16 %v499, %v498
      %v521 = vpack.c.bf16 %v501, %v500
      %v522 = vpack.c.bf16 %v503, %v502
      %v523 = vpack.c.bf16 %v505, %v504
      %v524 = vpack.c.bf16 %v507, %v506
      %v525 = vpack.c.bf16 %v509, %v508
      %v526 = vpack.c.bf16 %v511, %v510
      %v527 = vpack.c.bf16 %v513, %v512
      %v528 = vpack.c.bf16 %v515, %v514
      %v529 = vpack.c.bf16 %v517, %v516
      %v530 = vld [vmem:[%s3] sm:$0xf]
      %v531 = vld [vmem:[%s3 + $0x4] sm:$0xf]
      %v532 = vld [vmem:[%s3 + $0x8] sm:$0xf]
      %v533 = vld [vmem:[%s3 + $0xc] sm:$0xf]
      %v534 = vld [vmem:[%s3 + $0x10] sm:$0xf]
      %v535 = vld [vmem:[%s3 + $0x14] sm:$0xf]
      %v536 = vld [vmem:[%s3 + $0x18] sm:$0xf]
      %v537 = vld [vmem:[%s3 + $0x1c] sm:$0xf]
      %v538 = vld [vmem:[%s3 + $0x20] sm:$0xf]
      %v539 = vld [vmem:[%s3 + $0x24] sm:$0xf]
      %v540 = vld [vmem:[%s3 + $0x28] sm:$0xf]
      %v541 = vld [vmem:[%s3 + $0x2c] sm:$0xf]
      %v542 = vld [vmem:[%s3 + $0x30] sm:$0xf]
      %v543 = vld [vmem:[%s3 + $0x34] sm:$0xf]
      %v544 = vld [vmem:[%s3 + $0x38] sm:$0xf]
      %v545 = vld [vmem:[%s3 + $0x3c] sm:$0xf]
      %v546 = vld [vmem:[%s4] sm:$0x1]
      %v548 = vlaneseq
      %v549 = vshrl.u32 %v548, 7
      %v550 = vsub.s32 0, %v549
      %v551 = vrot.slane %v546, %v550
      %v569 = vunpack.c.l.b16 %v530
      %v570 = vunpack.c.l.b16 %v531
      %v571 = vunpack.c.l.b16 %v532
      %v572 = vunpack.c.l.b16 %v533
      %v573 = vunpack.c.l.b16 %v534
      %v574 = vunpack.c.l.b16 %v535
      %v575 = vunpack.c.l.b16 %v536
      %v576 = vunpack.c.l.b16 %v537
      %v577 = vunpack.c.l.b16 %v538
      %v578 = vunpack.c.l.b16 %v539
      %v579 = vunpack.c.l.b16 %v540
      %v580 = vunpack.c.l.b16 %v541
      %v581 = vunpack.c.l.b16 %v542
      %v582 = vunpack.c.l.b16 %v543
      %v583 = vunpack.c.l.b16 %v544
      %v584 = vunpack.c.l.b16 %v545
      %v585 = vpack.c.b16 %v570, %v569
      %v586 = vpack.c.b16 %v572, %v571
      %v587 = vpack.c.b16 %v574, %v573
      %v588 = vpack.c.b16 %v576, %v575
      %v589 = vpack.c.b16 %v578, %v577
      %v590 = vpack.c.b16 %v580, %v579
      %v591 = vpack.c.b16 %v582, %v581
      %v592 = vpack.c.b16 %v584, %v583
      %601 = vmatprep.subr.bf16.mxu0 0
      %602 = vmatpush1.bf16.msra.mxu0 %v585
      %603 = vmatprep.subr.bf16.mxu0 0
      %604 = vmatpush1.bf16.msra.mxu0 %v586
      %605 = vmatprep.subr.bf16.mxu0 0
      %606 = vmatpush1.bf16.msra.mxu0 %v587
      %607 = vmatprep.subr.bf16.mxu0 0
      %608 = vmatpush1.bf16.msra.mxu0 %v588
      %609 = vmatprep.subr.bf16.mxu0 0
      %610 = vmatpush1.bf16.msra.mxu0 %v589
      %611 = vmatprep.subr.bf16.mxu0 0
      %612 = vmatpush1.bf16.msra.mxu0 %v590
      %613 = vmatprep.subr.bf16.mxu0 0
      %614 = vmatpush1.bf16.msra.mxu0 %v591
      %615 = vmatprep.subr.bf16.mxu0 0
      %616 = vmatpush1.bf16.msra.mxu0 %v592
      %617 = vmatprep.subr.bf16.mxu0 0
      %618 = vmatpush1.bf16.msra.mxu0 0
      %619 = vmatprep.subr.bf16.mxu0 0
      %620 = vmatpush1.bf16.msra.mxu0 0
      %621 = vmatprep.subr.bf16.mxu0 0
      %622 = vmatpush1.bf16.msra.mxu0 0
      %623 = vmatprep.subr.bf16.mxu0 0
      %624 = vmatpush1.bf16.msra.mxu0 0
      %625 = vmatprep.subr.bf16.mxu0 0
      %626 = vmatpush1.bf16.msra.mxu0 0
      %627 = vmatprep.subr.bf16.mxu0 0
      %628 = vmatpush1.bf16.msra.mxu0 0
      %629 = vmatprep.subr.bf16.mxu0 0
      %630 = vmatpush1.bf16.msra.mxu0 0
      %631 = vmatprep.subr.bf16.mxu0 0
      %632 = vmatpush1.bf16.msra.mxu0 0
      %633 = vmatprep.mubr.bf16.mxu0 0
      %634 = vmatmul.mubr.bf16.gmra.mrb[0].mxu0 %v518
      %v635 = vpop.f32.mrb[0].mxu0
      %v636 = vadd.f32 %v551, %v635
      %v637 = vpop.f32.mrb[0].mxu0
      %v638 = vpop.f32.mrb[0].mxu0
      %v639 = vadd.f32 %v551, %v638
      %v640 = vpop.f32.mrb[0].mxu0
      %641 = vmatprep.mubr.bf16.mxu0 0
      %642 = vmatmul.mubr.bf16.gmra.mrb[0].mxu0 %v519
      %v643 = vpop.f32.mrb[0].mxu0
      %v644 = vadd.f32 %v551, %v643
      %v645 = vpop.f32.mrb[0].mxu0
      %v646 = vpop.f32.mrb[0].mxu0
      %v647 = vadd.f32 %v551, %v646
      %v648 = vpop.f32.mrb[0].mxu0
      %649 = vmatprep.mubr.bf16.mxu0 0
      %650 = vmatmul.mubr.bf16.gmra.mrb[0].mxu0 %v520
      %v651 = vpop.f32.mrb[0].mxu0
      %v652 = vadd.f32 %v551, %v651
      %v653 = vpop.f32.mrb[0].mxu0
      %v654 = vpop.f32.mrb[0].mxu0
      %v655 = vadd.f32 %v551, %v654
      %v656 = vpop.f32.mrb[0].mxu0
      %657 = vmatprep.mubr.bf16.mxu0 0
      %658 = vmatmul.mubr.bf16.gmra.mrb[0].mxu0 %v521
      %v659 = vpop.f32.mrb[0].mxu0
      %v660 = vadd.f32 %v551, %v659
      %v661 = vpop.f32.mrb[0].mxu0
      %v662 = vpop.f32.mrb[0].mxu0
      %v663 = vadd.f32 %v551, %v662
      %v664 = vpop.f32.mrb[0].mxu0
      %665 = vmatprep.mubr.bf16.mxu0 0
      %666 = vmatmul.mubr.bf16.gmra.mrb[0].mxu0 %v522
      %v667 = vpop.f32.mrb[0].mxu0
      %v668 = vadd.f32 %v551, %v667
      %v669 = vpop.f32.mrb[0].mxu0
      %v670 = vpop.f32.mrb[0].mxu0
      %v671 = vadd.f32 %v551, %v670
      %v672 = vpop.f32.mrb[0].mxu0
      %673 = vmatprep.mubr.bf16.mxu0 0
      %674 = vmatmul.mubr.bf16.gmra.mrb[0].mxu0 %v523
      %v675 = vpop.f32.mrb[0].mxu0
      %v676 = vadd.f32 %v551, %v675
      %v677 = vpop.f32.mrb[0].mxu0
      %v678 = vpop.f32.mrb[0].mxu0
      %v679 = vadd.f32 %v551, %v678
      %v680 = vpop.f32.mrb[0].mxu0
      %681 = vmatprep.mubr.bf16.mxu0 0
      %682 = vmatmul.mubr.bf16.gmra.mrb[0].mxu0 %v524
      %v683 = vpop.f32.mrb[0].mxu0
      %v684 = vadd.f32 %v551, %v683
      %v685 = vpop.f32.mrb[0].mxu0
      %v686 = vpop.f32.mrb[0].mxu0
      %v687 = vadd.f32 %v551, %v686
      %v688 = vpop.f32.mrb[0].mxu0
      %689 = vmatprep.mubr.bf16.mxu0 0
      %690 = vmatmul.mubr.bf16.gmra.mrb[0].mxu0 %v525
      %v691 = vpop.f32.mrb[0].mxu0
      %v692 = vadd.f32 %v551, %v691
      %v693 = vpop.f32.mrb[0].mxu0
      %v694 = vpop.f32.mrb[0].mxu0
      %v695 = vadd.f32 %v551, %v694
      %v696 = vpop.f32.mrb[0].mxu0
      %697 = vmatprep.mubr.bf16.mxu0 0
      %698 = vmatmul.mubr.bf16.gmra.mrb[0].mxu0 %v526
      %v699 = vpop.f32.mrb[0].mxu0
      %v700 = vadd.f32 %v551, %v699
      %v701 = vpop.f32.mrb[0].mxu0
      %v702 = vpop.f32.mrb[0].mxu0
      %v703 = vadd.f32 %v551, %v702
      %v704 = vpop.f32.mrb[0].mxu0
      %705 = vmatprep.mubr.bf16.mxu0 0
      %706 = vmatmul.mubr.bf16.gmra.mrb[0].mxu0 %v527
      %v707 = vpop.f32.mrb[0].mxu0
      %v708 = vadd.f32 %v551, %v707
      %v709 = vpop.f32.mrb[0].mxu0
      %v710 = vpop.f32.mrb[0].mxu0
      %v711 = vadd.f32 %v551, %v710
      %v712 = vpop.f32.mrb[0].mxu0
      %713 = vmatprep.mubr.bf16.mxu0 0
      %714 = vmatmul.mubr.bf16.gmra.mrb[0].mxu0 %v528
      %v715 = vpop.f32.mrb[0].mxu0
      %v716 = vadd.f32 %v551, %v715
      %v717 = vpop.f32.mrb[0].mxu0
      %v718 = vpop.f32.mrb[0].mxu0
      %v719 = vadd.f32 %v551, %v718
      %v720 = vpop.f32.mrb[0].mxu0
      %721 = vmatprep.mubr.bf16.mxu0 0
      %722 = vmatmul.mubr.bf16.gmra.mrb[0].mxu0 %v529
      %v723 = vpop.f32.mrb[0].mxu0
      %v724 = vadd.f32 %v551, %v723
      %v725 = vpop.f32.mrb[0].mxu0
      %v726 = vpop.f32.mrb[0].mxu0
      %v727 = vadd.f32 %v551, %v726
      %v728 = vpop.f32.mrb[0].mxu0
      %729 = vdwg.mxu0
      %v730 = vmax.f32 %v636, 0.0
      %v731 = vmax.f32 %v639, 0.0
      %v732 = vmax.f32 %v644, 0.0
      %v733 = vmax.f32 %v647, 0.0
      %v734 = vmax.f32 %v652, 0.0
      %v735 = vmax.f32 %v655, 0.0
      %v736 = vmax.f32 %v660, 0.0
      %v737 = vmax.f32 %v663, 0.0
      %v738 = vmax.f32 %v668, 0.0
      %v739 = vmax.f32 %v671, 0.0
      %v740 = vmax.f32 %v676, 0.0
      %v741 = vmax.f32 %v679, 0.0
      %v742 = vmax.f32 %v684, 0.0
      %v743 = vmax.f32 %v687, 0.0
      %v744 = vmax.f32 %v692, 0.0
      %v745 = vmax.f32 %v695, 0.0
      %v746 = vmax.f32 %v700, 0.0
      %v747 = vmax.f32 %v703, 0.0
      %v748 = vmax.f32 %v708, 0.0
      %v749 = vmax.f32 %v711, 0.0
      %v750 = vmax.f32 %v716, 0.0
      %v751 = vmax.f32 %v719, 0.0
      %v752 = vmax.f32 %v724, 0.0
      %v753 = vmax.f32 %v727, 0.0
      %v754 = vpack.c.bf16 %v731, %v730
      %v755 = vpack.c.bf16 %v733, %v732
      %v756 = vpack.c.bf16 %v735, %v734
      %v757 = vpack.c.bf16 %v737, %v736
      %v758 = vpack.c.bf16 %v739, %v738
      %v759 = vpack.c.bf16 %v741, %v740
      %v760 = vpack.c.bf16 %v743, %v742
      %v761 = vpack.c.bf16 %v745, %v744
      %v762 = vpack.c.bf16 %v747, %v746
      %v763 = vpack.c.bf16 %v749, %v748
      %v764 = vpack.c.bf16 %v751, %v750
      %v765 = vpack.c.bf16 %v753, %v752
      %s766 = scalar_lea.vmem %s3, 64
      %v767 = vld [vmem:[%s766] sm:$0xf]
      %v768 = vld [vmem:[%s766 + $0x4] sm:$0xf]
      %v769 = vld [vmem:[%s766 + $0x8] sm:$0xf]
      %v770 = vld [vmem:[%s766 + $0xc] sm:$0xf]
      %v771 = vld [vmem:[%s766 + $0x10] sm:$0xf]
      %v772 = vld [vmem:[%s766 + $0x14] sm:$0xf]
      %v773 = vld [vmem:[%s766 + $0x18] sm:$0xf]
      %v774 = vld [vmem:[%s766 + $0x1c] sm:$0xf]
      %v775 = vld [vmem:[%s766 + $0x20] sm:$0xf]
      %v776 = vld [vmem:[%s766 + $0x24] sm:$0xf]
      %v777 = vld [vmem:[%s766 + $0x28] sm:$0xf]
      %v778 = vld [vmem:[%s766 + $0x2c] sm:$0xf]
      %v779 = vld [vmem:[%s766 + $0x30] sm:$0xf]
      %v780 = vld [vmem:[%s766 + $0x34] sm:$0xf]
      %v781 = vld [vmem:[%s766 + $0x38] sm:$0xf]
      %v782 = vld [vmem:[%s766 + $0x3c] sm:$0xf]
      %s783 = scalar_lea.vmem %s4, 1
      %v784 = vld [vmem:[%s783] sm:$0x1]
      %v786 = vlaneseq
      %v787 = vshrl.u32 %v786, 7
      %v788 = vsub.s32 0, %v787
      %v789 = vrot.slane %v784, %v788
      %v807 = vunpack.c.l.b16 %v767
      %v808 = vunpack.c.l.b16 %v768
      %v809 = vunpack.c.l.b16 %v769
      %v810 = vunpack.c.l.b16 %v770
      %v811 = vunpack.c.l.b16 %v771
      %v812 = vunpack.c.l.b16 %v772
      %v813 = vunpack.c.l.b16 %v773
      %v814 = vunpack.c.l.b16 %v774
      %v815 = vunpack.c.l.b16 %v775
      %v816 = vunpack.c.l.b16 %v776
      %v817 = vunpack.c.l.b16 %v777
      %v818 = vunpack.c.l.b16 %v778
      %v819 = vunpack.c.l.b16 %v779
      %v820 = vunpack.c.l.b16 %v780
      %v821 = vunpack.c.l.b16 %v781
      %v822 = vunpack.c.l.b16 %v782
      %v823 = vpack.c.b16 %v808, %v807
      %v824 = vpack.c.b16 %v810, %v809
      %v825 = vpack.c.b16 %v812, %v811
      %v826 = vpack.c.b16 %v814, %v813
      %v827 = vpack.c.b16 %v816, %v815
      %v828 = vpack.c.b16 %v818, %v817
      %v829 = vpack.c.b16 %v820, %v819
      %v830 = vpack.c.b16 %v822, %v821
      %839 = vmatprep.subr.bf16.mxu0 0
      %840 = vmatpush1.bf16.msra.mxu0 %v823
      %841 = vmatprep.subr.bf16.mxu0 0
      %842 = vmatpush1.bf16.msra.mxu0 %v824
      %843 = vmatprep.subr.bf16.mxu0 0
      %844 = vmatpush1.bf16.msra.mxu0 %v825
      %845 = vmatprep.subr.bf16.mxu0 0
      %846 = vmatpush1.bf16.msra.mxu0 %v826
      %847 = vmatprep.subr.bf16.mxu0 0
      %848 = vmatpush1.bf16.msra.mxu0 %v827
      %849 = vmatprep.subr.bf16.mxu0 0
      %850 = vmatpush1.bf16.msra.mxu0 %v828
      %851 = vmatprep.subr.bf16.mxu0 0
      %852 = vmatpush1.bf16.msra.mxu0 %v829
      %853 = vmatprep.subr.bf16.mxu0 0
      %854 = vmatpush1.bf16.msra.mxu0 %v830
      %855 = vmatprep.subr.bf16.mxu0 0
      %856 = vmatpush1.bf16.msra.mxu0 0
      %857 = vmatprep.subr.bf16.mxu0 0
      %858 = vmatpush1.bf16.msra.mxu0 0
      %859 = vmatprep.subr.bf16.mxu0 0
      %860 = vmatpush1.bf16.msra.mxu0 0
      %861 = vmatprep.subr.bf16.mxu0 0
      %862 = vmatpush1.bf16.msra.mxu0 0
      %863 = vmatprep.subr.bf16.mxu0 0
      %864 = vmatpush1.bf16.msra.mxu0 0
      %865 = vmatprep.subr.bf16.mxu0 0
      %866 = vmatpush1.bf16.msra.mxu0 0
      %867 = vmatprep.subr.bf16.mxu0 0
      %868 = vmatpush1.bf16.msra.mxu0 0
      %869 = vmatprep.subr.bf16.mxu0 0
      %870 = vmatpush1.bf16.msra.mxu0 0
      %871 = vmatprep.mubr.bf16.mxu0 0
      %872 = vmatmul.mubr.bf16.gmra.mrb[0].mxu0 %v754
      %v873 = vpop.f32.mrb[0].mxu0
      %v874 = vadd.f32 %v789, %v873
      %v875 = vpop.f32.mrb[0].mxu0
      %v876 = vpop.f32.mrb[0].mxu0
      %v877 = vadd.f32 %v789, %v876
      %v878 = vpop.f32.mrb[0].mxu0
      %879 = vmatprep.mubr.bf16.mxu0 0
      %880 = vmatmul.mubr.bf16.gmra.mrb[0].mxu0 %v755
      %v881 = vpop.f32.mrb[0].mxu0
      %v882 = vadd.f32 %v789, %v881
      %v883 = vpop.f32.mrb[0].mxu0
      %v884 = vpop.f32.mrb[0].mxu0
      %v885 = vadd.f32 %v789, %v884
      %v886 = vpop.f32.mrb[0].mxu0
      %887 = vmatprep.mubr.bf16.mxu0 0
      %888 = vmatmul.mubr.bf16.gmra.mrb[0].mxu0 %v756
      %v889 = vpop.f32.mrb[0].mxu0
      %v890 = vadd.f32 %v789, %v889
      %v891 = vpop.f32.mrb[0].mxu0
      %v892 = vpop.f32.mrb[0].mxu0
      %v893 = vadd.f32 %v789, %v892
      %v894 = vpop.f32.mrb[0].mxu0
      %895 = vmatprep.mubr.bf16.mxu0 0
      %896 = vmatmul.mubr.bf16.gmra.mrb[0].mxu0 %v757
      %v897 = vpop.f32.mrb[0].mxu0
      %v898 = vadd.f32 %v789, %v897
      %v899 = vpop.f32.mrb[0].mxu0
      %v900 = vpop.f32.mrb[0].mxu0
      %v901 = vadd.f32 %v789, %v900
      %v902 = vpop.f32.mrb[0].mxu0
      %903 = vmatprep.mubr.bf16.mxu0 0
      %904 = vmatmul.mubr.bf16.gmra.mrb[0].mxu0 %v758
      %v905 = vpop.f32.mrb[0].mxu0
      %v906 = vadd.f32 %v789, %v905
      %v907 = vpop.f32.mrb[0].mxu0
      %v908 = vpop.f32.mrb[0].mxu0
      %v909 = vadd.f32 %v789, %v908
      %v910 = vpop.f32.mrb[0].mxu0
      %911 = vmatprep.mubr.bf16.mxu0 0
      %912 = vmatmul.mubr.bf16.gmra.mrb[0].mxu0 %v759
      %v913 = vpop.f32.mrb[0].mxu0
      %v914 = vadd.f32 %v789, %v913
      %v915 = vpop.f32.mrb[0].mxu0
      %v916 = vpop.f32.mrb[0].mxu0
      %v917 = vadd.f32 %v789, %v916
      %v918 = vpop.f32.mrb[0].mxu0
      %919 = vmatprep.mubr.bf16.mxu0 0
      %920 = vmatmul.mubr.bf16.gmra.mrb[0].mxu0 %v760
      %v921 = vpop.f32.mrb[0].mxu0
      %v922 = vadd.f32 %v789, %v921
      %v923 = vpop.f32.mrb[0].mxu0
      %v924 = vpop.f32.mrb[0].mxu0
      %v925 = vadd.f32 %v789, %v924
      %v926 = vpop.f32.mrb[0].mxu0
      %927 = vmatprep.mubr.bf16.mxu0 0
      %928 = vmatmul.mubr.bf16.gmra.mrb[0].mxu0 %v761
      %v929 = vpop.f32.mrb[0].mxu0
      %v930 = vadd.f32 %v789, %v929
      %v931 = vpop.f32.mrb[0].mxu0
      %v932 = vpop.f32.mrb[0].mxu0
      %v933 = vadd.f32 %v789, %v932
      %v934 = vpop.f32.mrb[0].mxu0
      %935 = vmatprep.mubr.bf16.mxu0 0
      %936 = vmatmul.mubr.bf16.gmra.mrb[0].mxu0 %v762
      %v937 = vpop.f32.mrb[0].mxu0
      %v938 = vadd.f32 %v789, %v937
      %v939 = vpop.f32.mrb[0].mxu0
      %v940 = vpop.f32.mrb[0].mxu0
      %v941 = vadd.f32 %v789, %v940
      %v942 = vpop.f32.mrb[0].mxu0
      %943 = vmatprep.mubr.bf16.mxu0 0
      %944 = vmatmul.mubr.bf16.gmra.mrb[0].mxu0 %v763
      %v945 = vpop.f32.mrb[0].mxu0
      %v946 = vadd.f32 %v789, %v945
      %v947 = vpop.f32.mrb[0].mxu0
      %v948 = vpop.f32.mrb[0].mxu0
      %v949 = vadd.f32 %v789, %v948
      %v950 = vpop.f32.mrb[0].mxu0
      %951 = vmatprep.mubr.bf16.mxu0 0
      %952 = vmatmul.mubr.bf16.gmra.mrb[0].mxu0 %v764
      %v953 = vpop.f32.mrb[0].mxu0
      %v954 = vadd.f32 %v789, %v953
      %v955 = vpop.f32.mrb[0].mxu0
      %v956 = vpop.f32.mrb[0].mxu0
      %v957 = vadd.f32 %v789, %v956
      %v958 = vpop.f32.mrb[0].mxu0
      %959 = vmatprep.mubr.bf16.mxu0 0
      %960 = vmatmul.mubr.bf16.gmra.mrb[0].mxu0 %v765
      %v961 = vpop.f32.mrb[0].mxu0
      %v962 = vadd.f32 %v789, %v961
      %v963 = vpop.f32.mrb[0].mxu0
      %v964 = vpop.f32.mrb[0].mxu0
      %v965 = vadd.f32 %v789, %v964
      %v966 = vpop.f32.mrb[0].mxu0
      %967 = vdwg.mxu0
      %vm968 = vcmask 261120
      %969 = vst.msk [vmem:[%s226] sm:$0xff] %vm968, %v874
      %970 = vst.msk [vmem:[%s226 + $0x8] sm:$0xff] %vm968, %v877
      %971 = vst.msk [vmem:[%s226 + $0x10] sm:$0xff] %vm968, %v882
      %972 = vst.msk [vmem:[%s226 + $0x18] sm:$0xff] %vm968, %v885
      %973 = vst.msk [vmem:[%s226 + $0x20] sm:$0xff] %vm968, %v890
      %974 = vst.msk [vmem:[%s226 + $0x28] sm:$0xff] %vm968, %v893
      %975 = vst.msk [vmem:[%s226 + $0x30] sm:$0xff] %vm968, %v898
      %976 = vst.msk [vmem:[%s226 + $0x38] sm:$0xff] %vm968, %v901
      %977 = vst.msk [vmem:[%s226 + $0x40] sm:$0xff] %vm968, %v906
      %978 = vst.msk [vmem:[%s226 + $0x48] sm:$0xff] %vm968, %v909
      %979 = vst.msk [vmem:[%s226 + $0x50] sm:$0xff] %vm968, %v914
      %980 = vst.msk [vmem:[%s226 + $0x58] sm:$0xff] %vm968, %v917
      %981 = vst.msk [vmem:[%s226 + $0x60] sm:$0xff] %vm968, %v922
      %982 = vst.msk [vmem:[%s226 + $0x68] sm:$0xff] %vm968, %v925
      %983 = vst.msk [vmem:[%s226 + $0x70] sm:$0xff] %vm968, %v930
      %984 = vst.msk [vmem:[%s226 + $0x78] sm:$0xff] %vm968, %v933
      %985 = vst.msk [vmem:[%s226 + $0x80] sm:$0xff] %vm968, %v938
      %986 = vst.msk [vmem:[%s226 + $0x88] sm:$0xff] %vm968, %v941
      %987 = vst.msk [vmem:[%s226 + $0x90] sm:$0xff] %vm968, %v946
      %988 = vst.msk [vmem:[%s226 + $0x98] sm:$0xff] %vm968, %v949
      %989 = vst.msk [vmem:[%s226 + $0xa0] sm:$0xff] %vm968, %v954
      %990 = vst.msk [vmem:[%s226 + $0xa8] sm:$0xff] %vm968, %v957
      %991 = vst.msk [vmem:[%s226 + $0xb0] sm:$0xff] %vm968, %v962
      %992 = vst.msk [vmem:[%s226 + $0xb8] sm:$0xff] %vm968, %v965
      %s993 = smul.u32 24, %s16
      %p994 = scmp.lt.s32.totalorder %s993, 47
      %s995 = scalar_select %p994, %s993, 47
      %s996 = smul.addr %s995, 8
      %s997 = scalar_lea.vmem %s5, %s996
      // Predicated region
      $region41: #{dnn_forward.1} parent=39 // pred_check
        %p998 = pneg %p144
      $region42: #{dnn_forward.1} parent=39 // pred_check_branch
        %1000 = sbr.rel (%p998) target = $region44
      $region43: #{dnn_forward.1} parent=39 // pred_region
        %s1001 = smul.u32 24, %s16
      $region44: #{dnn_forward.1} parent=39 // pred_fallthru
        _
    $region40: #{dnn_forward.1} parent=5 // pred_fallthru
      _
    %p1002 = scmp.le.s32.totalorder 2, %s11
    // Predicated region
    $region45: #{dnn_forward.1} parent=5 // pred_check
      %p1003 = pneg %p1002
    $region46: #{dnn_forward.1} parent=5 // pred_check_branch
      %1005 = sbr.rel (%p1003) target = $region48
    $region47: #{dnn_forward.1} parent=5 // pred_region
      %s1006 = ssub.s32 %s11, 2
      // Predicated region
      $region49: #{dnn_forward.1} parent=47 // pred_check
        %p1007 = pneg %p150
      $region50: #{dnn_forward.1} parent=47 // pred_check_branch
        %1009 = sbr.rel (%p1007) target = $region52
      $region51: #{dnn_forward.1} parent=47 // pred_region
        %s1010 = smul.u32 24, %s17
        %p1011 = scmp.lt.s32.totalorder %s1010, 47
        %s1012 = scalar_select %p1011, %s1010, 47
        %s1013 = smul.addr %s1012, 8
        %s1014 = scalar_lea.vmem %s5, %s1013
      $region52: #{dnn_forward.1} parent=47 // pred_fallthru
        _
    $region48: #{dnn_forward.1} parent=5 // pred_fallthru
      _
  $region6: #{dnn_forward.1} parent=0 // loop_footer
    %s15 = sadd.s32 1, %s11
  $region7: #{dnn_forward.1} parent=0 // loop_footer_branch
    %10 = sbr.rel target = $region3
  $region8: #{dnn_forward.1} parent=0 // loop_exit
    _

</llo_original>
